<compile_context>
chip_gen: v7x
topology: tpu7x:2x2x1
jax: 0.10.0
libtpu: 0.0.40
codegen_flags: <defaults>
</compile_context>

<pallas_src>
import jax
import jax.numpy as jnp
from jax.experimental import pallas as pl
from jax.experimental.pallas import tpu as pltpu


def mlp_kernel(x_ref,
               w1_ref, b1_ref,
               w2_ref, b2_ref,
               w3_ref, b3_ref,
               w4_ref, b4_ref,
               w5_ref, b5_ref,
               o_ref):
    # Activations are (features, batch_tile): batch on the lane axis.
    h = x_ref[...]

    h = jnp.dot(w1_ref[...], h, preferred_element_type=jnp.float32) + b1_ref[...]
    h = jnp.maximum(h, 0.0)

    h = jnp.dot(w2_ref[...], h, preferred_element_type=jnp.float32) + b2_ref[...]
    h = jnp.maximum(h, 0.0)

    h = jnp.dot(w3_ref[...], h, preferred_element_type=jnp.float32) + b3_ref[...]
    h = jnp.maximum(h, 0.0)

    h = jnp.dot(w4_ref[...], h, preferred_element_type=jnp.float32) + b4_ref[...]
    h = jnp.maximum(h, 0.0)

    h = jnp.dot(w5_ref[...], h, preferred_element_type=jnp.float32) + b5_ref[...]

    o_ref[...] = h.astype(o_ref.dtype)


def _round_up(n, m):
    return ((n + m - 1) // m) * m


def _padded_bytes(shape, itemsize=4):
    """Bytes of a 2-D f32 buffer after (8, 128) sublane/lane padding."""
    r = _round_up(max(int(shape[0]), 1), 8)
    c = _round_up(max(int(shape[1]), 1), 128)
    return r * c * itemsize


def _choose_tiling(B, *, max_tile=2048, lane_mult=256):
    """Pick (batch_tile, n_steps).

    batch_tile is a multiple of 256 lanes (fills v6e/v7x 256-wide MXU columns,
    and is a multiple of v5e's 128).  Batches up to `max_tile` run as a single
    grid step (this net is latency-bound, not bandwidth-bound).  Larger
    batches use an even number of steps so v7x's two TensorCores split the
    "parallel" grid axis evenly.
    """
    if B <= max_tile:
        return _round_up(max(B, lane_mult), lane_mult), 1
    n_steps = -(-B // max_tile)
    if n_steps % 2:
        n_steps += 1
    tile = _round_up(-(-B // n_steps), lane_mult)
    return tile, n_steps


def boundary_augmented_net_forward(x, params, *, batch_tile=None):
    """x: (B, input_size) float32.

    params: dict of w1..w5 in PyTorch-native (out, in) layout and b1..b5 as
    (out, 1) columns.  Returns (B, output_size).
    """
    B, in_dim = x.shape

    if batch_tile is None:
        batch_tile, n_steps = _choose_tiling(B)
    else:
        assert batch_tile % 128 == 0, "batch_tile must be a multiple of 128 lanes"
        n_steps = -(-B // batch_tile)

    B_pad = batch_tile * n_steps

    # Transpose so batch lies on the lane axis; zero-pad to the tile multiple.
    xt = x.T  # (in_dim, B)
    if B_pad != B:
        xt = jnp.pad(xt, ((0, 0), (0, B_pad - B)))

    w1, b1 = params["w1"], params["b1"]
    w2, b2 = params["w2"], params["b2"]
    w3, b3 = params["w3"], params["b3"]
    w4, b4 = params["w4"], params["b4"]
    w5, b5 = params["w5"], params["b5"]
    out_dim = w5.shape[0]
    weights = (w1, b1, w2, b2, w3, b3, w4, b4, w5, b5)

    # VMEM budget sanity: double-buffered x/out tiles, double-buffered
    # (lane-padded) weights/biases, plus the five per-layer intermediates.
    vmem_limit = 32 << 20  # safe on v5e/v6e (128 MiB phys) and v7x (64 MiB phys)
    weight_bytes = sum(_padded_bytes(a.shape) for a in weights)
    hidden_dims = (w1.shape[0], w2.shape[0], w3.shape[0], w4.shape[0], out_dim)
    interm_bytes = sum(_padded_bytes((h, batch_tile)) for h in hidden_dims)
    tile_bytes = (2 * _padded_bytes((in_dim, batch_tile))
                  + 2 * _padded_bytes((out_dim, batch_tile))
                  + 2 * weight_bytes
                  + interm_bytes)
    assert tile_bytes < vmem_limit, (tile_bytes, vmem_limit)

    def full_spec(arr):
        # Whole (small) weight / bias lives in VMEM; constant index_map means
        # Pallas DMAs it once and keeps it resident across all grid steps.
        return pl.BlockSpec(arr.shape, lambda i: (0, 0))

    grid = (n_steps,)

    # Advisory cost hint for XLA's scheduler.
    dims = [in_dim] + list(hidden_dims)
    flops = 2 * B_pad * sum(dims[i] * dims[i + 1] for i in range(5))
    bytes_accessed = B_pad * (in_dim + out_dim) * 4 + weight_bytes
    cost = pl.CostEstimate(flops=flops, transcendentals=0,
                           bytes_accessed=bytes_accessed)

    out_t = pl.pallas_call(
        mlp_kernel,
        out_shape=jax.ShapeDtypeStruct((out_dim, B_pad), x.dtype),
        grid_spec=pltpu.PrefetchScalarGridSpec(
            num_scalar_prefetch=0,
            grid=grid,
            in_specs=[
                pl.BlockSpec((in_dim, batch_tile), lambda i: (0, i)),
                full_spec(w1), full_spec(b1),
                full_spec(w2), full_spec(b2),
                full_spec(w3), full_spec(b3),
                full_spec(w4), full_spec(b4),
                full_spec(w5), full_spec(b5),
            ],
            out_specs=pl.BlockSpec((out_dim, batch_tile), lambda i: (0, i)),
        ),
        compiler_params=pltpu.CompilerParams(
            dimension_semantics=("parallel",),
            vmem_limit_bytes=vmem_limit,
        ),
        cost_estimate=cost,
    )(xt, *weights)

    # Back to (B, out_dim); drop the padded batch columns.
    return out_t[:, :B].T


def init_params(key, input_size, hidden_sizes, output_size):
    """Deterministic synthetic parameters matching nn.Linear shapes.

    Weights stay in PyTorch's native (out, in) layout (used as the MXU LHS);
    biases are stored as (out, 1) columns for lane-broadcast in the kernel.
    """
    dims = [input_size] + list(hidden_sizes) + [output_size]
    params = {}
    for li in range(5):
        fan_in, fan_out = dims[li], dims[li + 1]
        key, kw, kb = jax.random.split(key, 3)
        bound = 1.0 / jnp.sqrt(fan_in)
        params[f"w{li + 1}"] = jax.random.uniform(
            kw, (fan_out, fan_in), jnp.float32, -bound, bound)
        params[f"b{li + 1}"] = jax.random.uniform(
            kb, (fan_out, 1), jnp.float32, -bound, bound)
    return params


def reference_forward(x, params):
    """Plain-JAX reference mirroring the PyTorch forward."""
    h = x
    for li in range(1, 5):
        h = jnp.maximum(h @ params[f"w{li}"].T + params[f"b{li}"].T, 0.0)
    return h @ params["w5"].T + params["b5"].T


# TODO(synk): integrate_boundary() (bdry/degen weight mutation) is a training-time
# parameter update with undefined helpers here; only forward() is implemented.

if __name__ == "__main__":
    input_size = 16
    hidden_sizes = [32, 32, 32, 32]
    output_size = 8
    batch = 2

    key = jax.random.PRNGKey(0)
    key, kx = jax.random.split(key)
    x = jax.random.normal(kx, (batch, input_size), jnp.float32)

    params = init_params(jax.random.PRNGKey(42), input_size, hidden_sizes, output_size)

    out = boundary_augmented_net_forward(x, params)
    out = jax.block_until_ready(out)

    ref = reference_forward(x, params)
    assert out.shape == (batch, output_size), out.shape
    assert jnp.allclose(out, ref, atol=1e-5, rtol=1e-5), "mismatch vs reference"

    # Medium batch: single large lane-dense tile (768 lanes), ragged padding.
    key, kx2 = jax.random.split(key)
    xb = jax.random.normal(kx2, (600, input_size), jnp.float32)
    outb = jax.block_until_ready(boundary_augmented_net_forward(xb, params))
    refb = reference_forward(xb, params)
    assert outb.shape == (600, output_size), outb.shape
    assert jnp.allclose(outb, refb, atol=1e-5, rtol=1e-5), "mismatch (medium batch)"

    # Large batch: multi-step pipelined path with an even grid length
    # (balances v7x's two TensorCores on the "parallel" axis).
    key, kx3 = jax.random.split(key)
    xc = jax.random.normal(kx3, (5000, input_size), jnp.float32)
    outc = jax.block_until_ready(boundary_augmented_net_forward(xc, params))
    refc = reference_forward(xc, params)
    assert outc.shape == (5000, output_size), outc.shape
    assert jnp.allclose(outc, refc, atol=1e-4, rtol=1e-5), "mismatch (large batch)"

    print("KERNEL_OK")
</pallas_src>

<mosaic_0001>
module attributes {stable_mosaic.version = 11 : i64} {
  func.func @mlp_kernel(%arg0: i32, %arg1: memref<16x256xf32, #tpu.memory_space<vmem>>, %arg2: memref<32x16xf32, #tpu.memory_space<vmem>>, %arg3: memref<32x1xf32, #tpu.memory_space<vmem>>, %arg4: memref<32x32xf32, #tpu.memory_space<vmem>>, %arg5: memref<32x1xf32, #tpu.memory_space<vmem>>, %arg6: memref<32x32xf32, #tpu.memory_space<vmem>>, %arg7: memref<32x1xf32, #tpu.memory_space<vmem>>, %arg8: memref<32x32xf32, #tpu.memory_space<vmem>>, %arg9: memref<32x1xf32, #tpu.memory_space<vmem>>, %arg10: memref<8x32xf32, #tpu.memory_space<vmem>>, %arg11: memref<8x1xf32, #tpu.memory_space<vmem>>, %arg12: memref<8x256xf32, #tpu.memory_space<vmem>>) attributes {dimension_semantics = [#tpu.dimension_semantics<parallel>], iteration_bounds = array<i64: 1>, scalar_prefetch = 0 : i64, scratch_operands = 0 : i64, tpu.core_type = #tpu.core_type<tc>, window_params = [{transform_indices = @transform_0, window_bounds = array<i64: 16, 256>}, {pipeline_mode = #tpu.pipeline_mode<synchronous>, transform_indices = @transform_1, window_bounds = array<i64: 32, 16>}, {pipeline_mode = #tpu.pipeline_mode<synchronous>, transform_indices = @transform_2, window_bounds = array<i64: 32, 1>}, {pipeline_mode = #tpu.pipeline_mode<synchronous>, transform_indices = @transform_3, window_bounds = array<i64: 32, 32>}, {pipeline_mode = #tpu.pipeline_mode<synchronous>, transform_indices = @transform_4, window_bounds = array<i64: 32, 1>}, {pipeline_mode = #tpu.pipeline_mode<synchronous>, transform_indices = @transform_5, window_bounds = array<i64: 32, 32>}, {pipeline_mode = #tpu.pipeline_mode<synchronous>, transform_indices = @transform_6, window_bounds = array<i64: 32, 1>}, {pipeline_mode = #tpu.pipeline_mode<synchronous>, transform_indices = @transform_7, window_bounds = array<i64: 32, 32>}, {pipeline_mode = #tpu.pipeline_mode<synchronous>, transform_indices = @transform_8, window_bounds = array<i64: 32, 1>}, {pipeline_mode = #tpu.pipeline_mode<synchronous>, transform_indices = @transform_9, window_bounds = array<i64: 8, 32>}, {pipeline_mode = #tpu.pipeline_mode<synchronous>, transform_indices = @transform_10, window_bounds = array<i64: 8, 1>}, {transform_indices = @transform_11, window_bounds = array<i64: 8, 256>}]} {
    %c0 = arith.constant 0 : index
    %c0_0 = arith.constant 0 : index
    %0 = vector.load %arg1[%c0, %c0_0] : memref<16x256xf32, #tpu.memory_space<vmem>>, vector<16x256xf32>
    %c0_1 = arith.constant 0 : index
    %c0_2 = arith.constant 0 : index
    %1 = vector.load %arg2[%c0_1, %c0_2] : memref<32x16xf32, #tpu.memory_space<vmem>>, vector<32x16xf32>
    %cst = arith.constant dense<0.000000e+00> : vector<32x256xf32>
    %2 = tpu.matmul %1, %0, %cst {dimension_numbers = #tpu.dot_dimension_numbers<[1], [0], [0], [1], [0, 0, 1, 1], [], []>} : vector<32x16xf32>, vector<16x256xf32>, vector<32x256xf32> -> vector<32x256xf32>
    %c0_3 = arith.constant 0 : index
    %c0_4 = arith.constant 0 : index
    %3 = vector.load %arg3[%c0_3, %c0_4] : memref<32x1xf32, #tpu.memory_space<vmem>>, vector<32x1xf32>
    %4 = vector.broadcast %3 : vector<32x1xf32> to vector<32x256xf32>
    %5 = arith.addf %2, %4 : vector<32x256xf32>
    %cst_5 = arith.constant 0.000000e+00 : f32
    %6 = vector.broadcast %cst_5 : f32 to vector<32x256xf32>
    %7 = arith.maximumf %5, %6 : vector<32x256xf32>
    %c0_6 = arith.constant 0 : index
    %c0_7 = arith.constant 0 : index
    %8 = vector.load %arg4[%c0_6, %c0_7] : memref<32x32xf32, #tpu.memory_space<vmem>>, vector<32x32xf32>
    %cst_8 = arith.constant dense<0.000000e+00> : vector<32x256xf32>
    %9 = tpu.matmul %8, %7, %cst_8 {dimension_numbers = #tpu.dot_dimension_numbers<[1], [0], [0], [1], [0, 0, 1, 1], [], []>} : vector<32x32xf32>, vector<32x256xf32>, vector<32x256xf32> -> vector<32x256xf32>
    %c0_9 = arith.constant 0 : index
    %c0_10 = arith.constant 0 : index
    %10 = vector.load %arg5[%c0_9, %c0_10] : memref<32x1xf32, #tpu.memory_space<vmem>>, vector<32x1xf32>
    %11 = vector.broadcast %10 : vector<32x1xf32> to vector<32x256xf32>
    %12 = arith.addf %9, %11 : vector<32x256xf32>
    %cst_11 = arith.constant 0.000000e+00 : f32
    %13 = vector.broadcast %cst_11 : f32 to vector<32x256xf32>
    %14 = arith.maximumf %12, %13 : vector<32x256xf32>
    %c0_12 = arith.constant 0 : index
    %c0_13 = arith.constant 0 : index
    %15 = vector.load %arg6[%c0_12, %c0_13] : memref<32x32xf32, #tpu.memory_space<vmem>>, vector<32x32xf32>
    %cst_14 = arith.constant dense<0.000000e+00> : vector<32x256xf32>
    %16 = tpu.matmul %15, %14, %cst_14 {dimension_numbers = #tpu.dot_dimension_numbers<[1], [0], [0], [1], [0, 0, 1, 1], [], []>} : vector<32x32xf32>, vector<32x256xf32>, vector<32x256xf32> -> vector<32x256xf32>
    %c0_15 = arith.constant 0 : index
    %c0_16 = arith.constant 0 : index
    %17 = vector.load %arg7[%c0_15, %c0_16] : memref<32x1xf32, #tpu.memory_space<vmem>>, vector<32x1xf32>
    %18 = vector.broadcast %17 : vector<32x1xf32> to vector<32x256xf32>
    %19 = arith.addf %16, %18 : vector<32x256xf32>
    %cst_17 = arith.constant 0.000000e+00 : f32
    %20 = vector.broadcast %cst_17 : f32 to vector<32x256xf32>
    %21 = arith.maximumf %19, %20 : vector<32x256xf32>
    %c0_18 = arith.constant 0 : index
    %c0_19 = arith.constant 0 : index
    %22 = vector.load %arg8[%c0_18, %c0_19] : memref<32x32xf32, #tpu.memory_space<vmem>>, vector<32x32xf32>
    %cst_20 = arith.constant dense<0.000000e+00> : vector<32x256xf32>
    %23 = tpu.matmul %22, %21, %cst_20 {dimension_numbers = #tpu.dot_dimension_numbers<[1], [0], [0], [1], [0, 0, 1, 1], [], []>} : vector<32x32xf32>, vector<32x256xf32>, vector<32x256xf32> -> vector<32x256xf32>
    %c0_21 = arith.constant 0 : index
    %c0_22 = arith.constant 0 : index
    %24 = vector.load %arg9[%c0_21, %c0_22] : memref<32x1xf32, #tpu.memory_space<vmem>>, vector<32x1xf32>
    %25 = vector.broadcast %24 : vector<32x1xf32> to vector<32x256xf32>
    %26 = arith.addf %23, %25 : vector<32x256xf32>
    %cst_23 = arith.constant 0.000000e+00 : f32
    %27 = vector.broadcast %cst_23 : f32 to vector<32x256xf32>
    %28 = arith.maximumf %26, %27 : vector<32x256xf32>
    %c0_24 = arith.constant 0 : index
    %c0_25 = arith.constant 0 : index
    %29 = vector.load %arg10[%c0_24, %c0_25] : memref<8x32xf32, #tpu.memory_space<vmem>>, vector<8x32xf32>
    %cst_26 = arith.constant dense<0.000000e+00> : vector<8x256xf32>
    %30 = tpu.matmul %29, %28, %cst_26 {dimension_numbers = #tpu.dot_dimension_numbers<[1], [0], [0], [1], [0, 0, 1, 1], [], []>} : vector<8x32xf32>, vector<32x256xf32>, vector<8x256xf32> -> vector<8x256xf32>
    %c0_27 = arith.constant 0 : index
    %c0_28 = arith.constant 0 : index
    %31 = vector.load %arg11[%c0_27, %c0_28] : memref<8x1xf32, #tpu.memory_space<vmem>>, vector<8x1xf32>
    %32 = vector.broadcast %31 : vector<8x1xf32> to vector<8x256xf32>
    %33 = arith.addf %30, %32 : vector<8x256xf32>
    %c0_29 = arith.constant 0 : index
    %c0_30 = arith.constant 0 : index
    %34 = vector.load %arg12[%c0_29, %c0_30] : memref<8x256xf32, #tpu.memory_space<vmem>>, vector<8x256xf32>
    tpu.vector_store %arg12[%c0_29, %c0_30], %33 {strides = array<i32>} : memref<8x256xf32, #tpu.memory_space<vmem>>, vector<8x256xf32>,
    return
  }
  func.func @transform_0(%arg0: i32) -> (i32, i32) {
    %c0_i32 = arith.constant 0 : i32
    %c0_i32_0 = arith.constant 0 : i32
    return %c0_i32, %arg0 : i32, i32
  }
  func.func @transform_1(%arg0: i32) -> (i32, i32) {
    %c0_i32 = arith.constant 0 : i32
    %c0_i32_0 = arith.constant 0 : i32
    %c0_i32_1 = arith.constant 0 : i32
    return %c0_i32, %c0_i32_0 : i32, i32
  }
  func.func @transform_2(%arg0: i32) -> (i32, i32) {
    %c0_i32 = arith.constant 0 : i32
    %c0_i32_0 = arith.constant 0 : i32
    %c0_i32_1 = arith.constant 0 : i32
    return %c0_i32, %c0_i32_0 : i32, i32
  }
  func.func @transform_3(%arg0: i32) -> (i32, i32) {
    %c0_i32 = arith.constant 0 : i32
    %c0_i32_0 = arith.constant 0 : i32
    %c0_i32_1 = arith.constant 0 : i32
    return %c0_i32, %c0_i32_0 : i32, i32
  }
  func.func @transform_4(%arg0: i32) -> (i32, i32) {
    %c0_i32 = arith.constant 0 : i32
    %c0_i32_0 = arith.constant 0 : i32
    %c0_i32_1 = arith.constant 0 : i32
    return %c0_i32, %c0_i32_0 : i32, i32
  }
  func.func @transform_5(%arg0: i32) -> (i32, i32) {
    %c0_i32 = arith.constant 0 : i32
    %c0_i32_0 = arith.constant 0 : i32
    %c0_i32_1 = arith.constant 0 : i32
    return %c0_i32, %c0_i32_0 : i32, i32
  }
  func.func @transform_6(%arg0: i32) -> (i32, i32) {
    %c0_i32 = arith.constant 0 : i32
    %c0_i32_0 = arith.constant 0 : i32
    %c0_i32_1 = arith.constant 0 : i32
    return %c0_i32, %c0_i32_0 : i32, i32
  }
  func.func @transform_7(%arg0: i32) -> (i32, i32) {
    %c0_i32 = arith.constant 0 : i32
    %c0_i32_0 = arith.constant 0 : i32
    %c0_i32_1 = arith.constant 0 : i32
    return %c0_i32, %c0_i32_0 : i32, i32
  }
  func.func @transform_8(%arg0: i32) -> (i32, i32) {
    %c0_i32 = arith.constant 0 : i32
    %c0_i32_0 = arith.constant 0 : i32
    %c0_i32_1 = arith.constant 0 : i32
    return %c0_i32, %c0_i32_0 : i32, i32
  }
  func.func @transform_9(%arg0: i32) -> (i32, i32) {
    %c0_i32 = arith.constant 0 : i32
    %c0_i32_0 = arith.constant 0 : i32
    %c0_i32_1 = arith.constant 0 : i32
    return %c0_i32, %c0_i32_0 : i32, i32
  }
  func.func @transform_10(%arg0: i32) -> (i32, i32) {
    %c0_i32 = arith.constant 0 : i32
    %c0_i32_0 = arith.constant 0 : i32
    %c0_i32_1 = arith.constant 0 : i32
    return %c0_i32, %c0_i32_0 : i32, i32
  }
  func.func @transform_11(%arg0: i32) -> (i32, i32) {
    %c0_i32 = arith.constant 0 : i32
    %c0_i32_0 = arith.constant 0 : i32
    return %c0_i32, %arg0 : i32, i32
  }
}

</mosaic_0001>

<llo_original>
// kernel: tpu_custom_call.1
$region0: #{tpu_custom_call.1}
  #allocation0 [shape = 'u32[]', space=smem, size = 0x4, offset = 0x4, fixed_abs, tag = 'smem constant byte address 0x4 - core index']
  #allocation1 [shape = 'u32[144,128]{1,0:T(1,128)}', space=vmem, size = 0x12000, scoped, tag = 'internal scratch']
  %s0 = inlined_call_operand.vmem [shape: f32[16,256], index: 0, kind: input, shape index: {}]
  %s1 = inlined_call_operand.vmem [shape: f32[32,16], index: 1, kind: input, shape index: {}]
  %s2 = inlined_call_operand.vmem [shape: f32[32,1], index: 2, kind: input, shape index: {}]
  %s3 = inlined_call_operand.vmem [shape: f32[32,32], index: 3, kind: input, shape index: {}]
  %s4 = inlined_call_operand.vmem [shape: f32[32,1], index: 4, kind: input, shape index: {}]
  %s5 = inlined_call_operand.vmem [shape: f32[32,32], index: 5, kind: input, shape index: {}]
  %s6 = inlined_call_operand.vmem [shape: f32[32,1], index: 6, kind: input, shape index: {}]
  %s7 = inlined_call_operand.vmem [shape: f32[32,32], index: 7, kind: input, shape index: {}]
  %s8 = inlined_call_operand.vmem [shape: f32[32,1], index: 8, kind: input, shape index: {}]
  %s9 = inlined_call_operand.vmem [shape: f32[8,32], index: 9, kind: input, shape index: {}]
  %s10 = inlined_call_operand.vmem [shape: f32[8,1], index: 10, kind: input, shape index: {}]
  %s11 = inlined_call_operand.hbm [shape: f32[8,256], index: 11, kind: output, shape index: {}]
  %s12 = sld [smem:[#allocation0]]
  $region54: #{tpu_custom_call.1} parent=0
    _
  %s14 = ssub.s32 1, %s12
  %s15 = scalar_select 0, %s14, %s12
  $region1: #{tpu_custom_call.1} parent=0
    #allocation2 [shape = 'u8[8192]{0}', space=vmem, size = 0x2000, scoped, tag = 'output window, operand 0, single buffered']
    #allocation3 [shape = 's32[1]{0}', space=sflag, size = 0x4, scoped, tag = 'scoped memory for tpu_custom_call.1']
    %16 = vsyncpa [#allocation3], 0
    // Predicated region
    $region2: #{tpu_custom_call.1} parent=1 // pred_check
      _
    $region3: #{tpu_custom_call.1} parent=1 // pred_check_branch
      %18 = sbr.rel (0) target = $region5
    $region4: #{tpu_custom_call.1} parent=1 // pred_region
      _
    $region5: #{tpu_custom_call.1} parent=1 // pred_fallthru
      _
    // Predicated region
    $region6: #{tpu_custom_call.1} parent=1 // pred_check
      _
    $region7: #{tpu_custom_call.1} parent=1 // pred_check_branch
      %20 = sbr.rel (0) target = $region9
    $region8: #{tpu_custom_call.1} parent=1 // pred_region
      _
    $region9: #{tpu_custom_call.1} parent=1 // pred_fallthru
      _
    // Predicated region
    $region10: #{tpu_custom_call.1} parent=1 // pred_check
      _
    $region11: #{tpu_custom_call.1} parent=1 // pred_check_branch
      %22 = sbr.rel (0) target = $region13
    $region12: #{tpu_custom_call.1} parent=1 // pred_region
      _
    $region13: #{tpu_custom_call.1} parent=1 // pred_fallthru
      _
    // Predicated region
    $region14: #{tpu_custom_call.1} parent=1 // pred_check
      _
    $region15: #{tpu_custom_call.1} parent=1 // pred_check_branch
      %24 = sbr.rel (0) target = $region17
    $region16: #{tpu_custom_call.1} parent=1 // pred_region
      _
    $region17: #{tpu_custom_call.1} parent=1 // pred_fallthru
      _
    // Predicated region
    $region18: #{tpu_custom_call.1} parent=1 // pred_check
      _
    $region19: #{tpu_custom_call.1} parent=1 // pred_check_branch
      %26 = sbr.rel (0) target = $region21
    $region20: #{tpu_custom_call.1} parent=1 // pred_region
      _
    $region21: #{tpu_custom_call.1} parent=1 // pred_fallthru
      _
    // Predicated region
    $region22: #{tpu_custom_call.1} parent=1 // pred_check
      _
    $region23: #{tpu_custom_call.1} parent=1 // pred_check_branch
      %28 = sbr.rel (0) target = $region25
    $region24: #{tpu_custom_call.1} parent=1 // pred_region
      _
    $region25: #{tpu_custom_call.1} parent=1 // pred_fallthru
      _
    // Predicated region
    $region26: #{tpu_custom_call.1} parent=1 // pred_check
      _
    $region27: #{tpu_custom_call.1} parent=1 // pred_check_branch
      %30 = sbr.rel (0) target = $region29
    $region28: #{tpu_custom_call.1} parent=1 // pred_region
      _
    $region29: #{tpu_custom_call.1} parent=1 // pred_fallthru
      _
    // Predicated region
    $region30: #{tpu_custom_call.1} parent=1 // pred_check
      _
    $region31: #{tpu_custom_call.1} parent=1 // pred_check_branch
      %32 = sbr.rel (0) target = $region33
    $region32: #{tpu_custom_call.1} parent=1 // pred_region
      _
    $region33: #{tpu_custom_call.1} parent=1 // pred_fallthru
      _
    // Predicated region
    $region34: #{tpu_custom_call.1} parent=1 // pred_check
      _
    $region35: #{tpu_custom_call.1} parent=1 // pred_check_branch
      %34 = sbr.rel (0) target = $region37
    $region36: #{tpu_custom_call.1} parent=1 // pred_region
      _
    $region37: #{tpu_custom_call.1} parent=1 // pred_fallthru
      _
    // Predicated region
    $region38: #{tpu_custom_call.1} parent=1 // pred_check
      _
    $region39: #{tpu_custom_call.1} parent=1 // pred_check_branch
      %36 = sbr.rel (0) target = $region41
    $region40: #{tpu_custom_call.1} parent=1 // pred_region
      _
    $region41: #{tpu_custom_call.1} parent=1 // pred_fallthru
      _
    // Predicated region
    $region42: #{tpu_custom_call.1} parent=1 // pred_check
      _
    $region43: #{tpu_custom_call.1} parent=1 // pred_check_branch
      %38 = sbr.rel (0) target = $region45
    $region44: #{tpu_custom_call.1} parent=1 // pred_region
      _
    $region45: #{tpu_custom_call.1} parent=1 // pred_fallthru
      _
    %v39 = vld [vmem:[%s0] sm:$0xff]
    %v40 = vld [vmem:[%s0 + $0x8] sm:$0xff]
    %v41 = vld [vmem:[%s0 + $0x10] sm:$0xff]
    %v42 = vld [vmem:[%s0 + $0x18] sm:$0xff]
    %v43 = vld [vmem:[%s1] sm:$0xff]
    %v44 = vld [vmem:[%s1 + $0x8] sm:$0xff]
    %v45 = vld [vmem:[%s1 + $0x10] sm:$0xff]
    %v46 = vld [vmem:[%s1 + $0x18] sm:$0xff]
    %v47 = vld [vmem:[%s2] sm:$0xff]
    %v48 = vld [vmem:[%s2 + $0x8] sm:$0xff]
    %v49 = vld [vmem:[%s2 + $0x10] sm:$0xff]
    %v50 = vld [vmem:[%s2 + $0x18] sm:$0xff]
    %52 = vset.pattern.permute.xlu0 0
    %53 = vperm.xlu0 %52, %v47
    %v54 = vpop.permute.xlu0 %53
    %57 = vset.pattern.permute.xlu0 0
    %58 = vperm.xlu0 %57, %v48
    %v59 = vpop.permute.xlu0 %58
    %62 = vset.pattern.permute.xlu0 0
    %63 = vperm.xlu0 %62, %v49
    %v64 = vpop.permute.xlu0 %63
    %67 = vset.pattern.permute.xlu0 0
    %68 = vperm.xlu0 %67, %v50
    %v69 = vpop.permute.xlu0 %68
    %vm71 = vcmask 130048
    %v73 = vsel %vm71, %v43, 0
    %v76 = vsel %vm71, %v44, 0
    %v79 = vsel %vm71, %v45, 0
    %v82 = vsel %vm71, %v46, 0
    %84 = vmatprep.subr.mxu0 %v40
    %85 = vmatpush1.msra.mxu0 %v39
    %86 = vmatprep.subr.mxu0 %v42
    %87 = vmatpush1.msra.mxu0 %v41
    %88 = vmatprep.subr.mxu0 0.0
    %89 = vmatpush1.msra.mxu0 0.0
    %90 = vmatprep.subr.mxu0 0.0
    %91 = vmatpush1.msra.mxu0 0.0
    %92 = vmatprep.subr.mxu0 0.0
    %93 = vmatpush1.msra.mxu0 0.0
    %94 = vmatprep.subr.mxu0 0.0
    %95 = vmatpush1.msra.mxu0 0.0
    %96 = vmatprep.subr.mxu0 0.0
    %97 = vmatpush1.msra.mxu0 0.0
    %98 = vmatprep.subr.mxu0 0.0
    %99 = vmatpush1.msra.mxu0 0.0
    %100 = vmatprep.subr.mxu0 0.0
    %101 = vmatpush1.msra.mxu0 0.0
    %102 = vmatprep.subr.mxu0 0.0
    %103 = vmatpush1.msra.mxu0 0.0
    %104 = vmatprep.subr.mxu0 0.0
    %105 = vmatpush1.msra.mxu0 0.0
    %106 = vmatprep.subr.mxu0 0.0
    %107 = vmatpush1.msra.mxu0 0.0
    %108 = vmatprep.subr.mxu0 0.0
    %109 = vmatpush1.msra.mxu0 0.0
    %110 = vmatprep.subr.mxu0 0.0
    %111 = vmatpush1.msra.mxu0 0.0
    %112 = vmatprep.subr.mxu0 0.0
    %113 = vmatpush1.msra.mxu0 0.0
    %114 = vmatprep.subr.mxu0 0.0
    %115 = vmatpush1.msra.mxu0 0.0
    %116 = vmatprep.subr.mxu0 0.0
    %117 = vmatpush1.msra.mxu0 0.0
    %118 = vmatprep.subr.mxu0 0.0
    %119 = vmatpush1.msra.mxu0 0.0
    %120 = vmatprep.subr.mxu0 0.0
    %121 = vmatpush1.msra.mxu0 0.0
    %122 = vmatprep.subr.mxu0 0.0
    %123 = vmatpush1.msra.mxu0 0.0
    %124 = vmatprep.subr.mxu0 0.0
    %125 = vmatpush1.msra.mxu0 0.0
    %126 = vmatprep.subr.mxu0 0.0
    %127 = vmatpush1.msra.mxu0 0.0
    %128 = vmatprep.subr.mxu0 0.0
    %129 = vmatpush1.msra.mxu0 0.0
    %130 = vmatprep.subr.mxu0 0.0
    %131 = vmatpush1.msra.mxu0 0.0
    %132 = vmatprep.subr.mxu0 0.0
    %133 = vmatpush1.msra.mxu0 0.0
    %134 = vmatprep.subr.mxu0 0.0
    %135 = vmatpush1.msra.mxu0 0.0
    %136 = vmatprep.subr.mxu0 0.0
    %137 = vmatpush1.msra.mxu0 0.0
    %138 = vmatprep.subr.mxu0 0.0
    %139 = vmatpush1.msra.mxu0 0.0
    %140 = vmatprep.subr.mxu0 0.0
    %141 = vmatpush1.msra.mxu0 0.0
    %142 = vmatprep.subr.mxu0 0.0
    %143 = vmatpush1.msra.mxu0 0.0
    %144 = vmatprep.subr.mxu0 0.0
    %145 = vmatpush1.msra.mxu0 0.0
    %146 = vmatprep.subr.mxu0 0.0
    %147 = vmatpush1.msra.mxu0 0.0
    %148 = vmatprep.mubr.f32.mxu0 0.0
    %149 = vmatmul.mubr.f32.gmra.mrb[0].mxu0 %v73
    %v150 = vpop.f32.mrb[0].mxu0
    %v151 = vadd.f32 %v54, %v150
    %v152 = vpop.f32.mrb[0].mxu0
    %v153 = vadd.f32 %v54, %v152
    %154 = vmatprep.mubr.f32.mxu0 0.0
    %155 = vmatmul.mubr.f32.gmra.mrb[0].mxu0 %v76
    %v156 = vpop.f32.mrb[0].mxu0
    %v157 = vadd.f32 %v59, %v156
    %v158 = vpop.f32.mrb[0].mxu0
    %v159 = vadd.f32 %v59, %v158
    %160 = vmatprep.mubr.f32.mxu0 0.0
    %161 = vmatmul.mubr.f32.gmra.mrb[0].mxu0 %v79
    %v162 = vpop.f32.mrb[0].mxu0
    %v163 = vadd.f32 %v64, %v162
    %v164 = vpop.f32.mrb[0].mxu0
    %v165 = vadd.f32 %v64, %v164
    %166 = vmatprep.mubr.f32.mxu0 0.0
    %167 = vmatmul.mubr.f32.gmra.mrb[0].mxu0 %v82
    %v168 = vpop.f32.mrb[0].mxu0
    %v169 = vadd.f32 %v69, %v168
    %v170 = vpop.f32.mrb[0].mxu0
    %v171 = vadd.f32 %v69, %v170
    %172 = vdwg.mxu0
    %v173 = vmax.f32 %v151, 0.0
    %v174 = vmax.f32 %v153, 0.0
    %v175 = vmax.f32 %v157, 0.0
    %v176 = vmax.f32 %v159, 0.0
    %v177 = vmax.f32 %v163, 0.0
    %v178 = vmax.f32 %v165, 0.0
    %v179 = vmax.f32 %v169, 0.0
    %v180 = vmax.f32 %v171, 0.0
    %v181 = vld [vmem:[%s3] sm:$0xff]
    %v182 = vld [vmem:[%s3 + $0x8] sm:$0xff]
    %v183 = vld [vmem:[%s3 + $0x10] sm:$0xff]
    %v184 = vld [vmem:[%s3 + $0x18] sm:$0xff]
    %v185 = vld [vmem:[%s4] sm:$0xff]
    %v186 = vld [vmem:[%s4 + $0x8] sm:$0xff]
    %v187 = vld [vmem:[%s4 + $0x10] sm:$0xff]
    %v188 = vld [vmem:[%s4 + $0x18] sm:$0xff]
    %190 = vset.pattern.permute.xlu0 0
    %191 = vperm.xlu0 %190, %v185
    %v192 = vpop.permute.xlu0 %191
    %195 = vset.pattern.permute.xlu0 0
    %196 = vperm.xlu0 %195, %v186
    %v197 = vpop.permute.xlu0 %196
    %200 = vset.pattern.permute.xlu0 0
    %201 = vperm.xlu0 %200, %v187
    %v202 = vpop.permute.xlu0 %201
    %205 = vset.pattern.permute.xlu0 0
    %206 = vperm.xlu0 %205, %v188
    %v207 = vpop.permute.xlu0 %206
    %vm209 = vcmask 261120
    %v211 = vsel %vm209, %v181, 0
    %v214 = vsel %vm209, %v182, 0
    %v217 = vsel %vm209, %v183, 0
    %v220 = vsel %vm209, %v184, 0
    %222 = vmatprep.subr.mxu0 %v174
    %223 = vmatpush1.msra.mxu0 %v173
    %224 = vmatprep.subr.mxu0 %v176
    %225 = vmatpush1.msra.mxu0 %v175
    %226 = vmatprep.subr.mxu0 %v178
    %227 = vmatpush1.msra.mxu0 %v177
    %228 = vmatprep.subr.mxu0 %v180
    %229 = vmatpush1.msra.mxu0 %v179
    %230 = vmatprep.subr.mxu0 0.0
    %231 = vmatpush1.msra.mxu0 0.0
    %232 = vmatprep.subr.mxu0 0.0
    %233 = vmatpush1.msra.mxu0 0.0
    %234 = vmatprep.subr.mxu0 0.0
    %235 = vmatpush1.msra.mxu0 0.0
    %236 = vmatprep.subr.mxu0 0.0
    %237 = vmatpush1.msra.mxu0 0.0
    %238 = vmatprep.subr.mxu0 0.0
    %239 = vmatpush1.msra.mxu0 0.0
    %240 = vmatprep.subr.mxu0 0.0
    %241 = vmatpush1.msra.mxu0 0.0
    %242 = vmatprep.subr.mxu0 0.0
    %243 = vmatpush1.msra.mxu0 0.0
    %244 = vmatprep.subr.mxu0 0.0
    %245 = vmatpush1.msra.mxu0 0.0
    %246 = vmatprep.subr.mxu0 0.0
    %247 = vmatpush1.msra.mxu0 0.0
    %248 = vmatprep.subr.mxu0 0.0
    %249 = vmatpush1.msra.mxu0 0.0
    %250 = vmatprep.subr.mxu0 0.0
    %251 = vmatpush1.msra.mxu0 0.0
    %252 = vmatprep.subr.mxu0 0.0
    %253 = vmatpush1.msra.mxu0 0.0
    %254 = vmatprep.subr.mxu0 0.0
    %255 = vmatpush1.msra.mxu0 0.0
    %256 = vmatprep.subr.mxu0 0.0
    %257 = vmatpush1.msra.mxu0 0.0
    %258 = vmatprep.subr.mxu0 0.0
    %259 = vmatpush1.msra.mxu0 0.0
    %260 = vmatprep.subr.mxu0 0.0
    %261 = vmatpush1.msra.mxu0 0.0
    %262 = vmatprep.subr.mxu0 0.0
    %263 = vmatpush1.msra.mxu0 0.0
    %264 = vmatprep.subr.mxu0 0.0
    %265 = vmatpush1.msra.mxu0 0.0
    %266 = vmatprep.subr.mxu0 0.0
    %267 = vmatpush1.msra.mxu0 0.0
    %268 = vmatprep.subr.mxu0 0.0
    %269 = vmatpush1.msra.mxu0 0.0
    %270 = vmatprep.subr.mxu0 0.0
    %271 = vmatpush1.msra.mxu0 0.0
    %272 = vmatprep.subr.mxu0 0.0
    %273 = vmatpush1.msra.mxu0 0.0
    %274 = vmatprep.subr.mxu0 0.0
    %275 = vmatpush1.msra.mxu0 0.0
    %276 = vmatprep.subr.mxu0 0.0
    %277 = vmatpush1.msra.mxu0 0.0
    %278 = vmatprep.subr.mxu0 0.0
    %279 = vmatpush1.msra.mxu0 0.0
    %280 = vmatprep.subr.mxu0 0.0
    %281 = vmatpush1.msra.mxu0 0.0
    %282 = vmatprep.subr.mxu0 0.0
    %283 = vmatpush1.msra.mxu0 0.0
    %284 = vmatprep.subr.mxu0 0.0
    %285 = vmatpush1.msra.mxu0 0.0
    %286 = vmatprep.mubr.f32.mxu0 0.0
    %287 = vmatmul.mubr.f32.gmra.mrb[0].mxu0 %v211
    %v288 = vpop.f32.mrb[0].mxu0
    %v289 = vadd.f32 %v192, %v288
    %v290 = vpop.f32.mrb[0].mxu0
    %v291 = vadd.f32 %v192, %v290
    %292 = vmatprep.mubr.f32.mxu0 0.0
    %293 = vmatmul.mubr.f32.gmra.mrb[0].mxu0 %v214
    %v294 = vpop.f32.mrb[0].mxu0
    %v295 = vadd.f32 %v197, %v294
    %v296 = vpop.f32.mrb[0].mxu0
    %v297 = vadd.f32 %v197, %v296
    %298 = vmatprep.mubr.f32.mxu0 0.0
    %299 = vmatmul.mubr.f32.gmra.mrb[0].mxu0 %v217
    %v300 = vpop.f32.mrb[0].mxu0
    %v301 = vadd.f32 %v202, %v300
    %v302 = vpop.f32.mrb[0].mxu0
    %v303 = vadd.f32 %v202, %v302
    %304 = vmatprep.mubr.f32.mxu0 0.0
    %305 = vmatmul.mubr.f32.gmra.mrb[0].mxu0 %v220
    %v306 = vpop.f32.mrb[0].mxu0
    %v307 = vadd.f32 %v207, %v306
    %v308 = vpop.f32.mrb[0].mxu0
    %v309 = vadd.f32 %v207, %v308
    %310 = vdwg.mxu0
    %v311 = vmax.f32 %v289, 0.0
    %v312 = vmax.f32 %v291, 0.0
    %v313 = vmax.f32 %v295, 0.0
    %v314 = vmax.f32 %v297, 0.0
    %v315 = vmax.f32 %v301, 0.0
    %v316 = vmax.f32 %v303, 0.0
    %v317 = vmax.f32 %v307, 0.0
    %v318 = vmax.f32 %v309, 0.0
    %v319 = vld [vmem:[%s5] sm:$0xff]
    %v320 = vld [vmem:[%s5 + $0x8] sm:$0xff]
    %v321 = vld [vmem:[%s5 + $0x10] sm:$0xff]
    %v322 = vld [vmem:[%s5 + $0x18] sm:$0xff]
    %v323 = vld [vmem:[%s6] sm:$0xff]
    %v324 = vld [vmem:[%s6 + $0x8] sm:$0xff]
    %v325 = vld [vmem:[%s6 + $0x10] sm:$0xff]
    %v326 = vld [vmem:[%s6 + $0x18] sm:$0xff]
    %328 = vset.pattern.permute.xlu0 0
    %329 = vperm.xlu0 %328, %v323
    %v330 = vpop.permute.xlu0 %329
    %333 = vset.pattern.permute.xlu0 0
    %334 = vperm.xlu0 %333, %v324
    %v335 = vpop.permute.xlu0 %334
    %338 = vset.pattern.permute.xlu0 0
    %339 = vperm.xlu0 %338, %v325
    %v340 = vpop.permute.xlu0 %339
    %343 = vset.pattern.permute.xlu0 0
    %344 = vperm.xlu0 %343, %v326
    %v345 = vpop.permute.xlu0 %344
    %v348 = vsel %vm209, %v319, 0
    %v351 = vsel %vm209, %v320, 0
    %v354 = vsel %vm209, %v321, 0
    %v357 = vsel %vm209, %v322, 0
    %359 = vmatprep.subr.mxu0 %v312
    %360 = vmatpush1.msra.mxu0 %v311
    %361 = vmatprep.subr.mxu0 %v314
    %362 = vmatpush1.msra.mxu0 %v313
    %363 = vmatprep.subr.mxu0 %v316
    %364 = vmatpush1.msra.mxu0 %v315
    %365 = vmatprep.subr.mxu0 %v318
    %366 = vmatpush1.msra.mxu0 %v317
    %367 = vmatprep.subr.mxu0 0.0
    %368 = vmatpush1.msra.mxu0 0.0
    %369 = vmatprep.subr.mxu0 0.0
    %370 = vmatpush1.msra.mxu0 0.0
    %371 = vmatprep.subr.mxu0 0.0
    %372 = vmatpush1.msra.mxu0 0.0
    %373 = vmatprep.subr.mxu0 0.0
    %374 = vmatpush1.msra.mxu0 0.0
    %375 = vmatprep.subr.mxu0 0.0
    %376 = vmatpush1.msra.mxu0 0.0
    %377 = vmatprep.subr.mxu0 0.0
    %378 = vmatpush1.msra.mxu0 0.0
    %379 = vmatprep.subr.mxu0 0.0
    %380 = vmatpush1.msra.mxu0 0.0
    %381 = vmatprep.subr.mxu0 0.0
    %382 = vmatpush1.msra.mxu0 0.0
    %383 = vmatprep.subr.mxu0 0.0
    %384 = vmatpush1.msra.mxu0 0.0
    %385 = vmatprep.subr.mxu0 0.0
    %386 = vmatpush1.msra.mxu0 0.0
    %387 = vmatprep.subr.mxu0 0.0
    %388 = vmatpush1.msra.mxu0 0.0
    %389 = vmatprep.subr.mxu0 0.0
    %390 = vmatpush1.msra.mxu0 0.0
    %391 = vmatprep.subr.mxu0 0.0
    %392 = vmatpush1.msra.mxu0 0.0
    %393 = vmatprep.subr.mxu0 0.0
    %394 = vmatpush1.msra.mxu0 0.0
    %395 = vmatprep.subr.mxu0 0.0
    %396 = vmatpush1.msra.mxu0 0.0
    %397 = vmatprep.subr.mxu0 0.0
    %398 = vmatpush1.msra.mxu0 0.0
    %399 = vmatprep.subr.mxu0 0.0
    %400 = vmatpush1.msra.mxu0 0.0
    %401 = vmatprep.subr.mxu0 0.0
    %402 = vmatpush1.msra.mxu0 0.0
    %403 = vmatprep.subr.mxu0 0.0
    %404 = vmatpush1.msra.mxu0 0.0
    %405 = vmatprep.subr.mxu0 0.0
    %406 = vmatpush1.msra.mxu0 0.0
    %407 = vmatprep.subr.mxu0 0.0
    %408 = vmatpush1.msra.mxu0 0.0
    %409 = vmatprep.subr.mxu0 0.0
    %410 = vmatpush1.msra.mxu0 0.0
    %411 = vmatprep.subr.mxu0 0.0
    %412 = vmatpush1.msra.mxu0 0.0
    %413 = vmatprep.subr.mxu0 0.0
    %414 = vmatpush1.msra.mxu0 0.0
    %415 = vmatprep.subr.mxu0 0.0
    %416 = vmatpush1.msra.mxu0 0.0
    %417 = vmatprep.subr.mxu0 0.0
    %418 = vmatpush1.msra.mxu0 0.0
    %419 = vmatprep.subr.mxu0 0.0
    %420 = vmatpush1.msra.mxu0 0.0
    %421 = vmatprep.subr.mxu0 0.0
    %422 = vmatpush1.msra.mxu0 0.0
    %423 = vmatprep.mubr.f32.mxu0 0.0
    %424 = vmatmul.mubr.f32.gmra.mrb[0].mxu0 %v348
    %v425 = vpop.f32.mrb[0].mxu0
    %v426 = vadd.f32 %v330, %v425
    %v427 = vpop.f32.mrb[0].mxu0
    %v428 = vadd.f32 %v330, %v427
    %429 = vmatprep.mubr.f32.mxu0 0.0
    %430 = vmatmul.mubr.f32.gmra.mrb[0].mxu0 %v351
    %v431 = vpop.f32.mrb[0].mxu0
    %v432 = vadd.f32 %v335, %v431
    %v433 = vpop.f32.mrb[0].mxu0
    %v434 = vadd.f32 %v335, %v433
    %435 = vmatprep.mubr.f32.mxu0 0.0
    %436 = vmatmul.mubr.f32.gmra.mrb[0].mxu0 %v354
    %v437 = vpop.f32.mrb[0].mxu0
    %v438 = vadd.f32 %v340, %v437
    %v439 = vpop.f32.mrb[0].mxu0
    %v440 = vadd.f32 %v340, %v439
    %441 = vmatprep.mubr.f32.mxu0 0.0
    %442 = vmatmul.mubr.f32.gmra.mrb[0].mxu0 %v357
    %v443 = vpop.f32.mrb[0].mxu0
    %v444 = vadd.f32 %v345, %v443
    %v445 = vpop.f32.mrb[0].mxu0
    %v446 = vadd.f32 %v345, %v445
    %447 = vdwg.mxu0
    %v448 = vmax.f32 %v426, 0.0
    %v449 = vmax.f32 %v428, 0.0
    %v450 = vmax.f32 %v432, 0.0
    %v451 = vmax.f32 %v434, 0.0
    %v452 = vmax.f32 %v438, 0.0
    %v453 = vmax.f32 %v440, 0.0
    %v454 = vmax.f32 %v444, 0.0
    %v455 = vmax.f32 %v446, 0.0
    %v456 = vld [vmem:[%s7] sm:$0xff]
    %v457 = vld [vmem:[%s7 + $0x8] sm:$0xff]
    %v458 = vld [vmem:[%s7 + $0x10] sm:$0xff]
    %v459 = vld [vmem:[%s7 + $0x18] sm:$0xff]
    %v460 = vld [vmem:[%s8] sm:$0xff]
    %v461 = vld [vmem:[%s8 + $0x8] sm:$0xff]
    %v462 = vld [vmem:[%s8 + $0x10] sm:$0xff]
    %v463 = vld [vmem:[%s8 + $0x18] sm:$0xff]
    %465 = vset.pattern.permute.xlu0 0
    %466 = vperm.xlu0 %465, %v460
    %v467 = vpop.permute.xlu0 %466
    %470 = vset.pattern.permute.xlu0 0
    %471 = vperm.xlu0 %470, %v461
    %v472 = vpop.permute.xlu0 %471
    %475 = vset.pattern.permute.xlu0 0
    %476 = vperm.xlu0 %475, %v462
    %v477 = vpop.permute.xlu0 %476
    %480 = vset.pattern.permute.xlu0 0
    %481 = vperm.xlu0 %480, %v463
    %v482 = vpop.permute.xlu0 %481
    %v485 = vsel %vm209, %v456, 0
    %v488 = vsel %vm209, %v457, 0
    %v491 = vsel %vm209, %v458, 0
    %v494 = vsel %vm209, %v459, 0
    %496 = vmatprep.subr.mxu0 %v449
    %497 = vmatpush1.msra.mxu0 %v448
    %498 = vmatprep.subr.mxu0 %v451
    %499 = vmatpush1.msra.mxu0 %v450
    %500 = vmatprep.subr.mxu0 %v453
    %501 = vmatpush1.msra.mxu0 %v452
    %502 = vmatprep.subr.mxu0 %v455
    %503 = vmatpush1.msra.mxu0 %v454
    %504 = vmatprep.subr.mxu0 0.0
    %505 = vmatpush1.msra.mxu0 0.0
    %506 = vmatprep.subr.mxu0 0.0
    %507 = vmatpush1.msra.mxu0 0.0
    %508 = vmatprep.subr.mxu0 0.0
    %509 = vmatpush1.msra.mxu0 0.0
    %510 = vmatprep.subr.mxu0 0.0
    %511 = vmatpush1.msra.mxu0 0.0
    %512 = vmatprep.subr.mxu0 0.0
    %513 = vmatpush1.msra.mxu0 0.0
    %514 = vmatprep.subr.mxu0 0.0
    %515 = vmatpush1.msra.mxu0 0.0
    %516 = vmatprep.subr.mxu0 0.0
    %517 = vmatpush1.msra.mxu0 0.0
    %518 = vmatprep.subr.mxu0 0.0
    %519 = vmatpush1.msra.mxu0 0.0
    %520 = vmatprep.subr.mxu0 0.0
    %521 = vmatpush1.msra.mxu0 0.0
    %522 = vmatprep.subr.mxu0 0.0
    %523 = vmatpush1.msra.mxu0 0.0
    %524 = vmatprep.subr.mxu0 0.0
    %525 = vmatpush1.msra.mxu0 0.0
    %526 = vmatprep.subr.mxu0 0.0
    %527 = vmatpush1.msra.mxu0 0.0
    %528 = vmatprep.subr.mxu0 0.0
    %529 = vmatpush1.msra.mxu0 0.0
    %530 = vmatprep.subr.mxu0 0.0
    %531 = vmatpush1.msra.mxu0 0.0
    %532 = vmatprep.subr.mxu0 0.0
    %533 = vmatpush1.msra.mxu0 0.0
    %534 = vmatprep.subr.mxu0 0.0
    %535 = vmatpush1.msra.mxu0 0.0
    %536 = vmatprep.subr.mxu0 0.0
    %537 = vmatpush1.msra.mxu0 0.0
    %538 = vmatprep.subr.mxu0 0.0
    %539 = vmatpush1.msra.mxu0 0.0
    %540 = vmatprep.subr.mxu0 0.0
    %541 = vmatpush1.msra.mxu0 0.0
    %542 = vmatprep.subr.mxu0 0.0
    %543 = vmatpush1.msra.mxu0 0.0
    %544 = vmatprep.subr.mxu0 0.0
    %545 = vmatpush1.msra.mxu0 0.0
    %546 = vmatprep.subr.mxu0 0.0
    %547 = vmatpush1.msra.mxu0 0.0
    %548 = vmatprep.subr.mxu0 0.0
    %549 = vmatpush1.msra.mxu0 0.0
    %550 = vmatprep.subr.mxu0 0.0
    %551 = vmatpush1.msra.mxu0 0.0
    %552 = vmatprep.subr.mxu0 0.0
    %553 = vmatpush1.msra.mxu0 0.0
    %554 = vmatprep.subr.mxu0 0.0
    %555 = vmatpush1.msra.mxu0 0.0
    %556 = vmatprep.subr.mxu0 0.0
    %557 = vmatpush1.msra.mxu0 0.0
    %558 = vmatprep.subr.mxu0 0.0
    %559 = vmatpush1.msra.mxu0 0.0
    %560 = vmatprep.mubr.f32.mxu0 0.0
    %561 = vmatmul.mubr.f32.gmra.mrb[0].mxu0 %v485
    %v562 = vpop.f32.mrb[0].mxu0
    %v563 = vadd.f32 %v467, %v562
    %v564 = vpop.f32.mrb[0].mxu0
    %v565 = vadd.f32 %v467, %v564
    %566 = vmatprep.mubr.f32.mxu0 0.0
    %567 = vmatmul.mubr.f32.gmra.mrb[0].mxu0 %v488
    %v568 = vpop.f32.mrb[0].mxu0
    %v569 = vadd.f32 %v472, %v568
    %v570 = vpop.f32.mrb[0].mxu0
    %v571 = vadd.f32 %v472, %v570
    %572 = vmatprep.mubr.f32.mxu0 0.0
    %573 = vmatmul.mubr.f32.gmra.mrb[0].mxu0 %v491
    %v574 = vpop.f32.mrb[0].mxu0
    %v575 = vadd.f32 %v477, %v574
    %v576 = vpop.f32.mrb[0].mxu0
    %v577 = vadd.f32 %v477, %v576
    %578 = vmatprep.mubr.f32.mxu0 0.0
    %579 = vmatmul.mubr.f32.gmra.mrb[0].mxu0 %v494
    %v580 = vpop.f32.mrb[0].mxu0
    %v581 = vadd.f32 %v482, %v580
    %v582 = vpop.f32.mrb[0].mxu0
    %v583 = vadd.f32 %v482, %v582
    %584 = vdwg.mxu0
    %v585 = vmax.f32 %v563, 0.0
    %v586 = vmax.f32 %v565, 0.0
    %v587 = vmax.f32 %v569, 0.0
    %v588 = vmax.f32 %v571, 0.0
    %v589 = vmax.f32 %v575, 0.0
    %v590 = vmax.f32 %v577, 0.0
    %v591 = vmax.f32 %v581, 0.0
    %v592 = vmax.f32 %v583, 0.0
    %v593 = vld [vmem:[%s9] sm:$0xff]
    %v594 = vld [vmem:[%s10] sm:$0xff]
    %596 = vset.pattern.permute.xlu0 0
    %597 = vperm.xlu0 %596, %v594
    %v598 = vpop.permute.xlu0 %597
    %v601 = vsel %vm209, %v593, 0
    %603 = vmatprep.subr.mxu0 %v586
    %604 = vmatpush1.msra.mxu0 %v585
    %605 = vmatprep.subr.mxu0 %v588
    %606 = vmatpush1.msra.mxu0 %v587
    %607 = vmatprep.subr.mxu0 %v590
    %608 = vmatpush1.msra.mxu0 %v589
    %609 = vmatprep.subr.mxu0 %v592
    %610 = vmatpush1.msra.mxu0 %v591
    %611 = vmatprep.subr.mxu0 0.0
    %612 = vmatpush1.msra.mxu0 0.0
    %613 = vmatprep.subr.mxu0 0.0
    %614 = vmatpush1.msra.mxu0 0.0
    %615 = vmatprep.subr.mxu0 0.0
    %616 = vmatpush1.msra.mxu0 0.0
    %617 = vmatprep.subr.mxu0 0.0
    %618 = vmatpush1.msra.mxu0 0.0
    %619 = vmatprep.subr.mxu0 0.0
    %620 = vmatpush1.msra.mxu0 0.0
    %621 = vmatprep.subr.mxu0 0.0
    %622 = vmatpush1.msra.mxu0 0.0
    %623 = vmatprep.subr.mxu0 0.0
    %624 = vmatpush1.msra.mxu0 0.0
    %625 = vmatprep.subr.mxu0 0.0
    %626 = vmatpush1.msra.mxu0 0.0
    %627 = vmatprep.subr.mxu0 0.0
    %628 = vmatpush1.msra.mxu0 0.0
    %629 = vmatprep.subr.mxu0 0.0
    %630 = vmatpush1.msra.mxu0 0.0
    %631 = vmatprep.subr.mxu0 0.0
    %632 = vmatpush1.msra.mxu0 0.0
    %633 = vmatprep.subr.mxu0 0.0
    %634 = vmatpush1.msra.mxu0 0.0
    %635 = vmatprep.subr.mxu0 0.0
    %636 = vmatpush1.msra.mxu0 0.0
    %637 = vmatprep.subr.mxu0 0.0
    %638 = vmatpush1.msra.mxu0 0.0
    %639 = vmatprep.subr.mxu0 0.0
    %640 = vmatpush1.msra.mxu0 0.0
    %641 = vmatprep.subr.mxu0 0.0
    %642 = vmatpush1.msra.mxu0 0.0
    %643 = vmatprep.subr.mxu0 0.0
    %644 = vmatpush1.msra.mxu0 0.0
    %645 = vmatprep.subr.mxu0 0.0
    %646 = vmatpush1.msra.mxu0 0.0
    %647 = vmatprep.subr.mxu0 0.0
    %648 = vmatpush1.msra.mxu0 0.0
    %649 = vmatprep.subr.mxu0 0.0
    %650 = vmatpush1.msra.mxu0 0.0
    %651 = vmatprep.subr.mxu0 0.0
    %652 = vmatpush1.msra.mxu0 0.0
    %653 = vmatprep.subr.mxu0 0.0
    %654 = vmatpush1.msra.mxu0 0.0
    %655 = vmatprep.subr.mxu0 0.0
    %656 = vmatpush1.msra.mxu0 0.0
    %657 = vmatprep.subr.mxu0 0.0
    %658 = vmatpush1.msra.mxu0 0.0
    %659 = vmatprep.subr.mxu0 0.0
    %660 = vmatpush1.msra.mxu0 0.0
    %661 = vmatprep.subr.mxu0 0.0
    %662 = vmatpush1.msra.mxu0 0.0
    %663 = vmatprep.subr.mxu0 0.0
    %664 = vmatpush1.msra.mxu0 0.0
    %665 = vmatprep.subr.mxu0 0.0
    %666 = vmatpush1.msra.mxu0 0.0
    %667 = vmatprep.mubr.f32.mxu0 0.0
    %668 = vmatmul.mubr.f32.gmra.mrb[0].mxu0 %v601
    %v669 = vpop.f32.mrb[0].mxu0
    %v670 = vadd.f32 %v598, %v669
    %v671 = vpop.f32.mrb[0].mxu0
    %v672 = vadd.f32 %v598, %v671
    %673 = vdwg.mxu0
    %674 = vst [vmem:[#allocation2] sm:$0xff] %v670
    %675 = vst [vmem:[#allocation2 + $0x8] sm:$0xff] %v672
    // Predicated region
    $region46: #{tpu_custom_call.1} parent=1 // pred_check
      _
    $region47: #{tpu_custom_call.1} parent=1 // pred_check_branch
      %677 = sbr.rel (0) target = $region49
    $region48: #{tpu_custom_call.1} parent=1 // pred_region
      %s679 = ssub.s32 256, 256
      %680 = vsyncadd [#allocation3], %s679
      %s682 = sshll.u32 [#allocation2], 4
      %s683 = int_to_ptr.vmem [resolvable:$true] %s682
      %685 = dma.vmem_to_hbm [thread:$0]  %s683, 256, %s11, [#allocation3]
    $region49: #{tpu_custom_call.1} parent=1 // pred_fallthru
      _
    // Predicated region
    $region50: #{tpu_custom_call.1} parent=1 // pred_check
      _
    $region51: #{tpu_custom_call.1} parent=1 // pred_check_branch
      %687 = sbr.rel (0) target = $region53
    $region52: #{tpu_custom_call.1} parent=1 // pred_region
      %688 = dma.done [#allocation3], 256
    $region53: #{tpu_custom_call.1} parent=1 // pred_fallthru
      _
    %689 = vsyncpa [#allocation3], 1

</llo_original>
